<compile_context>
chip_gen: v5e
topology: v5e:2x2
jax: 0.10.0
libtpu: 0.0.40
codegen_flags: <defaults>
</compile_context>

<pallas_src>
import jax
import jax.numpy as jnp
from jax import lax
from jax.experimental import pallas as pl
from jax.experimental.pallas import tpu as pltpu

LANE = 128
_NEG_SLOPE = 0.01  # torch.nn.LeakyReLU default

# standard contraction: x(B, K) . w(K, N) -> (B, N); weights are stored pre-transposed.
_DN = (((1,), (0,)), ((), ()))


def _round_up(n, m):
    return ((n + m - 1) // m) * m


def _leaky_relu(h):
    # maximum(h, slope*h) == LeakyReLU for slope in (0,1); matches torch at h == 0.
    return jnp.maximum(h, _NEG_SLOPE * h)


def _mlp3_kernel(x_ref, w1_ref, b1_ref, w2_ref, b2_ref, w3_ref, o_ref):
    # layer 1: MXU matmul (f32 accumulation) + bias + LeakyReLU on live vregs
    h = lax.dot_general(x_ref[...], w1_ref[...], _DN,
                        preferred_element_type=jnp.float32)
    h = _leaky_relu(h + b1_ref[...])
    # layer 2
    h = lax.dot_general(h, w2_ref[...], _DN,
                        preferred_element_type=jnp.float32)
    h = _leaky_relu(h + b2_ref[...])
    # layer 3 (no bias); output feature dim is unpadded -> single masked store
    out = lax.dot_general(h, w3_ref[...], _DN,
                          preferred_element_type=jnp.float32)
    o_ref[...] = out.astype(o_ref.dtype)


def prepare_params(w1, b1, w2, b2, w3):
    """One-time parameter prep (call at load time, NOT per forward).

    Inputs in torch nn.Linear layout:
      w1: (intern, input), b1: (intern,), w2: (intern, intern), b2: (intern,),
      w3: (output, intern).
    Returns lane-padded, (K, N)-transposed copies so every MXU tile is aligned and no
    per-call pad/transpose ops are emitted for the static parameters.  Zero padding is
    exact: LeakyReLU(0) = 0 and padded weight rows/cols & bias lanes are zero, so padded
    lanes stay exactly zero through all three layers.
    """
    intern_dim, input_dim = w1.shape
    output_dim = w3.shape[0]
    in_p = _round_up(input_dim, LANE)
    hid_p = _round_up(intern_dim, LANE)

    w1p = jnp.zeros((in_p, hid_p), w1.dtype).at[:input_dim, :intern_dim].set(w1.T)
    b1p = jnp.zeros((1, hid_p), b1.dtype).at[0, :intern_dim].set(b1)
    w2p = jnp.zeros((hid_p, hid_p), w2.dtype).at[:intern_dim, :intern_dim].set(w2.T)
    b2p = jnp.zeros((1, hid_p), b2.dtype).at[0, :intern_dim].set(b2)
    # keep the OUTPUT feature dim unpadded so the kernel writes (B, output_dim) directly
    w3p = jnp.zeros((hid_p, output_dim), w3.dtype).at[:intern_dim, :].set(w3.T)
    return w1p, b1p, w2p, b2p, w3p


def passive_model_layer3_forward(x, w1p, b1p, w2p, b2p, w3p, *, batch_tile=512):
    """x: (B, input_dim); remaining args from prepare_params()."""
    B, input_dim = x.shape
    in_p, hid_p = w1p.shape
    output_dim = w3p.shape[1]

    # only remaining per-call pad; allow_input_fusion lets XLA fuse it into the operand DMA
    xp = x if in_p == input_dim else jnp.pad(x, ((0, 0), (0, in_p - input_dim)))

    cost = pl.CostEstimate(
        flops=2 * B * (in_p * hid_p + hid_p * hid_p + hid_p * output_dim),
        transcendentals=0,
        bytes_accessed=4 * (B * in_p + in_p * hid_p + hid_p * hid_p
                            + hid_p * output_dim + 2 * hid_p + B * output_dim),
    )
    fuse_x_only = [True] + [False] * 5  # weights/biases are pre-padded, nothing to fuse

    if B <= batch_tile:
        # Launch-overhead-bound regime: single invocation, whole arrays resident in VMEM
        # (~200 KiB total), no grid / pipeline machinery.
        vmem = pl.BlockSpec(memory_space=pltpu.MemorySpace.VMEM)
        return pl.pallas_call(
            _mlp3_kernel,
            out_shape=jax.ShapeDtypeStruct((B, output_dim), x.dtype),
            in_specs=[vmem] * 6,
            out_specs=vmem,
            compiler_params=pltpu.CompilerParams(allow_input_fusion=fuse_x_only),
            cost_estimate=cost,
        )(xp, w1p, b1p, w2p, b2p, w3p)

    # Large-batch path: batch-tiled grid keeps per-tile VMEM inside v7x's 64 MiB
    # (32 MiB scoped) budget; weights/biases stay resident via index_map -> (0, 0)
    # (DMA'd once); "parallel" semantics shards the batch across v7x's 2 TensorCores.
    # TODO(synk): for very large memory-bound B, narrow x / weights to bf16 at the dot
    # inputs (keep bias+LeakyReLU in the f32 accumulator) to halve HBM/VMEM traffic.
    tb = batch_tile  # multiple of 8; sweep 256-2048 within VMEM budget
    grid_spec = pltpu.PrefetchScalarGridSpec(
        num_scalar_prefetch=0,
        grid=(pl.cdiv(B, tb),),
        in_specs=[
            pl.BlockSpec((tb, in_p), lambda i: (i, 0)),
            pl.BlockSpec((in_p, hid_p), lambda i: (0, 0)),
            pl.BlockSpec((1, hid_p), lambda i: (0, 0)),
            pl.BlockSpec((hid_p, hid_p), lambda i: (0, 0)),
            pl.BlockSpec((1, hid_p), lambda i: (0, 0)),
            pl.BlockSpec((hid_p, output_dim), lambda i: (0, 0)),
        ],
        out_specs=pl.BlockSpec((tb, output_dim), lambda i: (i, 0)),
    )
    return pl.pallas_call(
        _mlp3_kernel,
        out_shape=jax.ShapeDtypeStruct((B, output_dim), x.dtype),
        grid_spec=grid_spec,
        compiler_params=pltpu.CompilerParams(
            dimension_semantics=("parallel",),
            allow_input_fusion=fuse_x_only,
            vmem_limit_bytes=32 * 1024 * 1024),
        cost_estimate=cost,
    )(xp, w1p, b1p, w2p, b2p, w3p)


if __name__ == "__main__":
    # small shapes consistent with the module: input_dim=32, intern_dim=64, output_dim=16
    B, input_dim, intern_dim, output_dim = 8, 32, 64, 16

    key = jax.random.PRNGKey(0)
    kx, kw1, kb1, kw2, kb2, kw3, kx2 = jax.random.split(key, 7)

    x = jax.random.normal(kx, (B, input_dim), dtype=jnp.float32)

    lim1 = 1.0 / jnp.sqrt(input_dim)
    w1 = jax.random.uniform(kw1, (intern_dim, input_dim), minval=-lim1, maxval=lim1,
                            dtype=jnp.float32)
    b1 = jax.random.uniform(kb1, (intern_dim,), minval=-lim1, maxval=lim1,
                            dtype=jnp.float32)

    lim2 = 1.0 / jnp.sqrt(intern_dim)
    w2 = jax.random.uniform(kw2, (intern_dim, intern_dim), minval=-lim2, maxval=lim2,
                            dtype=jnp.float32)
    b2 = jax.random.uniform(kb2, (intern_dim,), minval=-lim2, maxval=lim2,
                            dtype=jnp.float32)
    w3 = jax.random.uniform(kw3, (output_dim, intern_dim), minval=-lim2, maxval=lim2,
                            dtype=jnp.float32)

    # one-time parameter prep (pad + transpose), outside the per-call path
    params = prepare_params(w1, b1, w2, b2, w3)

    fwd = jax.jit(passive_model_layer3_forward, static_argnames=("batch_tile",))

    # plain-JAX reference of the PyTorch forward
    def ref_forward(xi):
        h = xi @ w1.T + b1
        h = jnp.maximum(h, 0.01 * h)
        h = h @ w2.T + b2
        h = jnp.maximum(h, 0.01 * h)
        return h @ w3.T

    # small-batch (no-grid, whole-array-in-VMEM) path
    out = jax.block_until_ready(fwd(x, *params))
    assert out.shape == (B, output_dim)
    assert jnp.allclose(out, ref_forward(x), atol=1e-5, rtol=1e-5)

    # large-batch (batch-tiled grid, resident weights) path
    Bl = 1024
    xl = jax.random.normal(kx2, (Bl, input_dim), dtype=jnp.float32)
    out_l = jax.block_until_ready(fwd(xl, *params, batch_tile=256))
    assert out_l.shape == (Bl, output_dim)
    assert jnp.allclose(out_l, ref_forward(xl), atol=1e-5, rtol=1e-5)

    print("KERNEL_OK")
</pallas_src>

<mosaic_0001>
module attributes {stable_mosaic.version = 11 : i64} {
  func.func @_mlp3_kernel(%arg0: memref<8x128xf32, #tpu.memory_space<vmem>>, %arg1: memref<128x128xf32, #tpu.memory_space<vmem>>, %arg2: memref<1x128xf32, #tpu.memory_space<vmem>>, %arg3: memref<128x128xf32, #tpu.memory_space<vmem>>, %arg4: memref<1x128xf32, #tpu.memory_space<vmem>>, %arg5: memref<128x16xf32, #tpu.memory_space<vmem>>, %arg6: memref<8x16xf32, #tpu.memory_space<vmem>>) attributes {dimension_semantics = [], scalar_prefetch = 0 : i64, scratch_operands = 0 : i64, tpu.core_type = #tpu.core_type<tc>} {
    %c0 = arith.constant 0 : index
    %c0_0 = arith.constant 0 : index
    %0 = vector.load %arg0[%c0, %c0_0] : memref<8x128xf32, #tpu.memory_space<vmem>>, vector<8x128xf32>
    %c0_1 = arith.constant 0 : index
    %c0_2 = arith.constant 0 : index
    %1 = vector.load %arg1[%c0_1, %c0_2] : memref<128x128xf32, #tpu.memory_space<vmem>>, vector<128x128xf32>
    %cst = arith.constant dense<0.000000e+00> : vector<8x128xf32>
    %2 = tpu.matmul %0, %1, %cst {dimension_numbers = #tpu.dot_dimension_numbers<[1], [0], [0], [1], [0, 0, 1, 1], [], []>} : vector<8x128xf32>, vector<128x128xf32>, vector<8x128xf32> -> vector<8x128xf32>
    %c0_3 = arith.constant 0 : index
    %c0_4 = arith.constant 0 : index
    %3 = vector.load %arg2[%c0_3, %c0_4] : memref<1x128xf32, #tpu.memory_space<vmem>>, vector<1x128xf32>
    %4 = vector.broadcast %3 : vector<1x128xf32> to vector<8x128xf32>
    %5 = arith.addf %2, %4 : vector<8x128xf32>
    %cst_5 = arith.constant 0.00999999977 : f32
    %6 = vector.broadcast %cst_5 : f32 to vector<8x128xf32>
    %7 = arith.mulf %6, %5 : vector<8x128xf32>
    %8 = arith.maximumf %5, %7 : vector<8x128xf32>
    %c0_6 = arith.constant 0 : index
    %c0_7 = arith.constant 0 : index
    %9 = vector.load %arg3[%c0_6, %c0_7] : memref<128x128xf32, #tpu.memory_space<vmem>>, vector<128x128xf32>
    %cst_8 = arith.constant dense<0.000000e+00> : vector<8x128xf32>
    %10 = tpu.matmul %8, %9, %cst_8 {dimension_numbers = #tpu.dot_dimension_numbers<[1], [0], [0], [1], [0, 0, 1, 1], [], []>} : vector<8x128xf32>, vector<128x128xf32>, vector<8x128xf32> -> vector<8x128xf32>
    %c0_9 = arith.constant 0 : index
    %c0_10 = arith.constant 0 : index
    %11 = vector.load %arg4[%c0_9, %c0_10] : memref<1x128xf32, #tpu.memory_space<vmem>>, vector<1x128xf32>
    %12 = vector.broadcast %11 : vector<1x128xf32> to vector<8x128xf32>
    %13 = arith.addf %10, %12 : vector<8x128xf32>
    %cst_11 = arith.constant 0.00999999977 : f32
    %14 = vector.broadcast %cst_11 : f32 to vector<8x128xf32>
    %15 = arith.mulf %14, %13 : vector<8x128xf32>
    %16 = arith.maximumf %13, %15 : vector<8x128xf32>
    %c0_12 = arith.constant 0 : index
    %c0_13 = arith.constant 0 : index
    %17 = vector.load %arg5[%c0_12, %c0_13] : memref<128x16xf32, #tpu.memory_space<vmem>>, vector<128x16xf32>
    %cst_14 = arith.constant dense<0.000000e+00> : vector<8x16xf32>
    %18 = tpu.matmul %16, %17, %cst_14 {dimension_numbers = #tpu.dot_dimension_numbers<[1], [0], [0], [1], [0, 0, 1, 1], [], []>} : vector<8x128xf32>, vector<128x16xf32>, vector<8x16xf32> -> vector<8x16xf32>
    %c0_15 = arith.constant 0 : index
    %c0_16 = arith.constant 0 : index
    %19 = vector.load %arg6[%c0_15, %c0_16] : memref<8x16xf32, #tpu.memory_space<vmem>>, vector<8x16xf32>
    tpu.vector_store %arg6[%c0_15, %c0_16], %18 {strides = array<i32>} : memref<8x16xf32, #tpu.memory_space<vmem>>, vector<8x16xf32>,
    return
  }
}

</mosaic_0001>

<llo_original>
// kernel: passive_model_layer3_forward.2
$region0: #{passive_model_layer3_forward.2}
  #allocation0 [shape = 'u32[]', space=smem, size = 0x4, offset = 0x4, fixed_abs, tag = 'smem constant byte address 0x4 - core index']
  #allocation1 [shape = 'u32[72,128]{1,0:T(1,128)}', space=vmem, size = 0x9000, scoped, tag = 'internal scratch']
  #allocation2 [shape = 'u32[2048]{0}', space=vmem, size = 0x2000, scoped, tag = 'scoped memory for passive_model_layer3_forward.2']
  #allocation3 [shape = 'u32[2048]{0}', space=vmem, size = 0x2000, scoped, tag = 'scoped memory for passive_model_layer3_forward.2']
  #allocation4 [shape = 'u32[2048]{0}', space=vmem, size = 0x2000, scoped, tag = 'scoped memory for passive_model_layer3_forward.2']
  #allocation5 [shape = 'u32[2048]{0}', space=vmem, size = 0x2000, scoped, tag = 'scoped memory for passive_model_layer3_forward.2']
  #allocation6 [shape = 'u32[2048]{0}', space=vmem, size = 0x2000, scoped, tag = 'scoped memory for passive_model_layer3_forward.2']
  %s0 = inlined_call_operand.vmem [shape: f32[128,128], index: 0, kind: input, shape index: {}]
  %s1 = inlined_call_operand.vmem [shape: f32[1,128], index: 1, kind: input, shape index: {}]
  %s2 = inlined_call_operand.hbm [shape: f32[128,128], index: 2, kind: input, shape index: {}]
  %s3 = inlined_call_operand.vmem [shape: f32[1,128], index: 3, kind: input, shape index: {}]
  %s4 = inlined_call_operand.vmem [shape: f32[128,16], index: 4, kind: input, shape index: {}]
  %s5 = inlined_call_operand.vmem [shape: f32[8,32], index: 5, kind: input, shape index: {}]
  %s6 = inlined_call_operand.<no memory space> [shape: f32[], index: 6, kind: input, shape index: {}]
  %s7 = inlined_call_operand.hbm [shape: f32[8,16], index: 7, kind: output, shape index: {}]
  %s8 = sld [smem:[#allocation0]]
  $region38: #{passive_model_layer3_forward.2} parent=0
    _
  %s10 = ssub.s32 1, %s8
  %s11 = scalar_select 0, %s10, %s8
  %v12 = vstv %s6
  $region1: #{passive_model_layer3_forward.2} parent=0
    #allocation7 [shape = 'u8[65536]{0}', space=vmem, size = 0x10000, scoped, tag = 'input window, operand 3, single buffered']
    #allocation8 [shape = 's32[1]{0}', space=sflag, size = 0x4, scoped, tag = 'scoped memory for passive_model_layer3_forward.2']
    #allocation9 [shape = 's32[1]{0}', space=sflag, size = 0x4, scoped, tag = 'scoped memory for passive_model_layer3_forward.2']
    #allocation10 [shape = 'u8[4096]{0}', space=vmem, size = 0x1000, scoped, tag = 'output window, operand 0, single buffered']
    #allocation11 [shape = 'u8[4096]{0}', space=vmem, size = 0x1000, dematerialized = true, scoped, tag = 'FusionAdapter Buffer %fusion.1 = f32[8,128]{1,0:T(8,128)} fusion(%param_5.1, %param_6), kind=kLoop, calls=%fused_computation.1.clone, metadata={op_name="jit(passive_model_layer3_forward)/jit(_pad)/pad" stack_frame_id=1}']
    %13 = vsyncpa [#allocation8], 0
    %14 = vsyncpa [#allocation9], 0
    // Predicated region
    $region2: #{passive_model_layer3_forward.2} parent=1 // pred_check
      _
    $region3: #{passive_model_layer3_forward.2} parent=1 // pred_check_branch
      %16 = sbr.rel (0) target = $region5
    $region4: #{passive_model_layer3_forward.2} parent=1 // pred_region
      _
    $region5: #{passive_model_layer3_forward.2} parent=1 // pred_fallthru
      _
    // Predicated region
    $region6: #{passive_model_layer3_forward.2} parent=1 // pred_check
      _
    $region7: #{passive_model_layer3_forward.2} parent=1 // pred_check_branch
      %18 = sbr.rel (0) target = $region9
    $region8: #{passive_model_layer3_forward.2} parent=1 // pred_region
      _
    $region9: #{passive_model_layer3_forward.2} parent=1 // pred_fallthru
      _
    // Predicated region
    $region10: #{passive_model_layer3_forward.2} parent=1 // pred_check
      _
    $region11: #{passive_model_layer3_forward.2} parent=1 // pred_check_branch
      %20 = sbr.rel (0) target = $region13
    $region12: #{passive_model_layer3_forward.2} parent=1 // pred_region
      _
    $region13: #{passive_model_layer3_forward.2} parent=1 // pred_fallthru
      _
    // Predicated region
    $region14: #{passive_model_layer3_forward.2} parent=1 // pred_check
      _
    $region15: #{passive_model_layer3_forward.2} parent=1 // pred_check_branch
      %22 = sbr.rel (0) target = $region17
    $region16: #{passive_model_layer3_forward.2} parent=1 // pred_region
      %24 = vsyncadd [#allocation8], 0
      %s25 = sshll.u32 %s2, 4
      %s26 = int_to_ptr.hbm [resolvable:$true] %s25
      %s27 = sshll.u32 [#allocation7], 4
      %s28 = int_to_ptr.vmem [resolvable:$true] %s27
      %33 = dma.hbm_to_vmem [thread:$0]  %s26, 2048, %s28, [#allocation8], 128, 128, 8
    $region17: #{passive_model_layer3_forward.2} parent=1 // pred_fallthru
      _
    // Predicated region
    $region18: #{passive_model_layer3_forward.2} parent=1 // pred_check
      _
    $region19: #{passive_model_layer3_forward.2} parent=1 // pred_check_branch
      %35 = sbr.rel (0) target = $region21
    $region20: #{passive_model_layer3_forward.2} parent=1 // pred_region
      _
    $region21: #{passive_model_layer3_forward.2} parent=1 // pred_fallthru
      _
    // Predicated region
    $region22: #{passive_model_layer3_forward.2} parent=1 // pred_check
      _
    $region23: #{passive_model_layer3_forward.2} parent=1 // pred_check_branch
      %37 = sbr.rel (0) target = $region25
    $region24: #{passive_model_layer3_forward.2} parent=1 // pred_region
      _
    $region25: #{passive_model_layer3_forward.2} parent=1 // pred_fallthru
      _
    // Predicated region
    $region26: #{passive_model_layer3_forward.2} parent=1 // pred_check
      _
    $region27: #{passive_model_layer3_forward.2} parent=1 // pred_check_branch
      %39 = sbr.rel (0) target = $region29
    $region28: #{passive_model_layer3_forward.2} parent=1 // pred_region
      %41 = dma.done [#allocation8], 2048
    $region29: #{passive_model_layer3_forward.2} parent=1 // pred_fallthru
      _
    %v42 = vld [vmem:[%s5] sm:$0xff]
    %v43 = vlaneseq
    %v44 = vand.u32 %v43, 127
    %vm46 = vcmp.lt.s32.totalorder %v44, 32
    %v47 = vsel %vm46, %v42, %v12
    %s49 = ssub.s32 256, 1
    %50 = vst [vmem:[#allocation11] sm:%s49] %v47
    %v51 = vld [vmem:[#allocation11] sm:$0xff]
    %v52 = vld [vmem:[%s0] sm:$0xff]
    %v53 = vld [vmem:[%s0 + $0x8] sm:$0xff]
    %v54 = vld [vmem:[%s0 + $0x10] sm:$0xff]
    %v55 = vld [vmem:[%s0 + $0x18] sm:$0xff]
    %v56 = vld [vmem:[%s0 + $0x20] sm:$0xff]
    %v57 = vld [vmem:[%s0 + $0x28] sm:$0xff]
    %v58 = vld [vmem:[%s0 + $0x30] sm:$0xff]
    %v59 = vld [vmem:[%s0 + $0x38] sm:$0xff]
    %v60 = vld [vmem:[%s0 + $0x40] sm:$0xff]
    %v61 = vld [vmem:[%s0 + $0x48] sm:$0xff]
    %v62 = vld [vmem:[%s0 + $0x50] sm:$0xff]
    %v63 = vld [vmem:[%s0 + $0x58] sm:$0xff]
    %v64 = vld [vmem:[%s0 + $0x60] sm:$0xff]
    %v65 = vld [vmem:[%s0 + $0x68] sm:$0xff]
    %v66 = vld [vmem:[%s0 + $0x70] sm:$0xff]
    %v67 = vld [vmem:[%s0 + $0x78] sm:$0xff]
    %v68 = vld [vmem:[%s1] sm:$0x1]
    %v70 = vperm.slane %v68, 0
    %72 = vmatpush.msra.mxu0 %v67
    %73 = vmatpush.msra.mxu0 %v66
    %74 = vmatpush.msra.mxu0 %v65
    %75 = vmatpush.msra.mxu0 %v64
    %76 = vmatpush.msra.mxu0 %v63
    %77 = vmatpush.msra.mxu0 %v62
    %78 = vmatpush.msra.mxu0 %v61
    %79 = vmatpush.msra.mxu0 %v60
    %80 = vmatpush.msra.mxu0 %v59
    %81 = vmatpush.msra.mxu0 %v58
    %82 = vmatpush.msra.mxu0 %v57
    %83 = vmatpush.msra.mxu0 %v56
    %84 = vmatpush.msra.mxu0 %v55
    %85 = vmatpush.msra.mxu0 %v54
    %86 = vmatpush.msra.mxu0 %v53
    %87 = vmatpush.msra.mxu0 %v52
    %88 = vmatmul.f32.gmra.mxu0 %v51
    %v89 = vpop.f32.mrf.mxu0
    %v90 = vadd.f32 %v70, %v89
    %91 = vdwg.mxu0
    %v92 = vmul.f32 %v90, 0.01
    %v93 = vmax.f32 %v90, %v92
    %v94 = vld [vmem:[#allocation7] sm:$0xff]
    %v95 = vld [vmem:[#allocation7 + $0x8] sm:$0xff]
    %v96 = vld [vmem:[#allocation7 + $0x10] sm:$0xff]
    %v97 = vld [vmem:[#allocation7 + $0x18] sm:$0xff]
    %v98 = vld [vmem:[#allocation7 + $0x20] sm:$0xff]
    %v99 = vld [vmem:[#allocation7 + $0x28] sm:$0xff]
    %v100 = vld [vmem:[#allocation7 + $0x30] sm:$0xff]
    %v101 = vld [vmem:[#allocation7 + $0x38] sm:$0xff]
    %v102 = vld [vmem:[#allocation7 + $0x40] sm:$0xff]
    %v103 = vld [vmem:[#allocation7 + $0x48] sm:$0xff]
    %v104 = vld [vmem:[#allocation7 + $0x50] sm:$0xff]
    %v105 = vld [vmem:[#allocation7 + $0x58] sm:$0xff]
    %v106 = vld [vmem:[#allocation7 + $0x60] sm:$0xff]
    %v107 = vld [vmem:[#allocation7 + $0x68] sm:$0xff]
    %v108 = vld [vmem:[#allocation7 + $0x70] sm:$0xff]
    %v109 = vld [vmem:[#allocation7 + $0x78] sm:$0xff]
    %v110 = vld [vmem:[%s3] sm:$0x1]
    %v112 = vperm.slane %v110, 0
    %114 = vmatpush.msra.mxu0 %v109
    %115 = vmatpush.msra.mxu0 %v108
    %116 = vmatpush.msra.mxu0 %v107
    %117 = vmatpush.msra.mxu0 %v106
    %118 = vmatpush.msra.mxu0 %v105
    %119 = vmatpush.msra.mxu0 %v104
    %120 = vmatpush.msra.mxu0 %v103
    %121 = vmatpush.msra.mxu0 %v102
    %122 = vmatpush.msra.mxu0 %v101
    %123 = vmatpush.msra.mxu0 %v100
    %124 = vmatpush.msra.mxu0 %v99
    %125 = vmatpush.msra.mxu0 %v98
    %126 = vmatpush.msra.mxu0 %v97
    %127 = vmatpush.msra.mxu0 %v96
    %128 = vmatpush.msra.mxu0 %v95
    %129 = vmatpush.msra.mxu0 %v94
    %130 = vmatmul.f32.gmra.mxu0 %v93
    %v131 = vpop.f32.mrf.mxu0
    %v132 = vadd.f32 %v112, %v131
    %133 = vdwg.mxu0
    %v134 = vmul.f32 %v132, 0.01
    %v135 = vmax.f32 %v132, %v134
    %v136 = vld [vmem:[%s4] sm:$0xff]
    %v137 = vld [vmem:[%s4 + $0x8] sm:$0xff]
    %v138 = vld [vmem:[%s4 + $0x10] sm:$0xff]
    %v139 = vld [vmem:[%s4 + $0x18] sm:$0xff]
    %v140 = vld [vmem:[%s4 + $0x20] sm:$0xff]
    %v141 = vld [vmem:[%s4 + $0x28] sm:$0xff]
    %v142 = vld [vmem:[%s4 + $0x30] sm:$0xff]
    %v143 = vld [vmem:[%s4 + $0x38] sm:$0xff]
    %v144 = vld [vmem:[%s4 + $0x40] sm:$0xff]
    %v145 = vld [vmem:[%s4 + $0x48] sm:$0xff]
    %v146 = vld [vmem:[%s4 + $0x50] sm:$0xff]
    %v147 = vld [vmem:[%s4 + $0x58] sm:$0xff]
    %v148 = vld [vmem:[%s4 + $0x60] sm:$0xff]
    %v149 = vld [vmem:[%s4 + $0x68] sm:$0xff]
    %v150 = vld [vmem:[%s4 + $0x70] sm:$0xff]
    %v151 = vld [vmem:[%s4 + $0x78] sm:$0xff]
    %152 = vmatpush.msra.mxu0 %v151
    %153 = vmatpush.msra.mxu0 %v150
    %154 = vmatpush.msra.mxu0 %v149
    %155 = vmatpush.msra.mxu0 %v148
    %156 = vmatpush.msra.mxu0 %v147
    %157 = vmatpush.msra.mxu0 %v146
    %158 = vmatpush.msra.mxu0 %v145
    %159 = vmatpush.msra.mxu0 %v144
    %160 = vmatpush.msra.mxu0 %v143
    %161 = vmatpush.msra.mxu0 %v142
    %162 = vmatpush.msra.mxu0 %v141
    %163 = vmatpush.msra.mxu0 %v140
    %164 = vmatpush.msra.mxu0 %v139
    %165 = vmatpush.msra.mxu0 %v138
    %166 = vmatpush.msra.mxu0 %v137
    %167 = vmatpush.msra.mxu0 %v136
    %168 = vmatmul.f32.gmra.mxu0 %v135
    %v169 = vpop.f32.mrf.mxu0
    %v170 = vadd.f32 0.0, %v169
    %171 = vdwg.mxu0
    %vm172 = vcmask 130048
    %173 = vst.msk [vmem:[#allocation10] sm:$0xff] %vm172, %v170
    // Predicated region
    $region30: #{passive_model_layer3_forward.2} parent=1 // pred_check
      _
    $region31: #{passive_model_layer3_forward.2} parent=1 // pred_check_branch
      %175 = sbr.rel (0) target = $region33
    $region32: #{passive_model_layer3_forward.2} parent=1 // pred_region
      %177 = vsyncadd [#allocation9], 0
      %s179 = sshll.u32 [#allocation10], 4
      %s180 = int_to_ptr.vmem [resolvable:$true] %s179
      %s181 = sshll.u32 %s7, 4
      %s182 = int_to_ptr.hbm [resolvable:$true] %s181
      %184 = dma.vmem_to_hbm [thread:$0]  %s180, 128, %s182, [#allocation9]
    $region33: #{passive_model_layer3_forward.2} parent=1 // pred_fallthru
      _
    // Predicated region
    $region34: #{passive_model_layer3_forward.2} parent=1 // pred_check
      _
    $region35: #{passive_model_layer3_forward.2} parent=1 // pred_check_branch
      %186 = sbr.rel (0) target = $region37
    $region36: #{passive_model_layer3_forward.2} parent=1 // pred_region
      %188 = dma.done [#allocation9], 128
    $region37: #{passive_model_layer3_forward.2} parent=1 // pred_fallthru
      _
    %189 = vsyncpa [#allocation8], 1
    %190 = vsyncpa [#allocation9], 1

</llo_original>
